<compile_context>
chip_gen: v6e
topology: v6e:2x2x1
jax: 0.10.0
libtpu: 0.0.40
codegen_flags: <defaults>
</compile_context>

<pallas_src>
import functools

import jax
import jax.numpy as jnp
from jax.experimental import pallas as pl
from jax.experimental.pallas import tpu as pltpu


def _round_up(x, m):
    return ((x + m - 1) // m) * m


# ----------------------------- Pallas kernels -----------------------------

def _matmul_kernel(a_ref, b_ref, o_ref, acc_ref):
    @pl.when(pl.program_id(2) == 0)
    def _():
        acc_ref[...] = jnp.zeros_like(acc_ref)

    acc_ref[...] += jnp.dot(a_ref[...], b_ref[...],
                            preferred_element_type=jnp.float32)

    @pl.when(pl.program_id(2) == pl.num_programs(2) - 1)
    def _():
        o_ref[...] = acc_ref[...].astype(o_ref.dtype)


@jax.jit
def pallas_matmul(a, b):
    """a:[M,K], b:[K,N] -> [M,N] f32.  bf16 MXU operands, f32 accumulator."""
    M, K = a.shape
    K2, N = b.shape
    assert K == K2
    a = a.astype(jnp.bfloat16)
    b = b.astype(jnp.bfloat16)

    tm = 256 if M >= 256 else _round_up(M, 16)
    Np = _round_up(N, 128)                   # lane-dense (unmasked) stores
    tn = 256 if Np % 256 == 0 else 128
    if K <= 2048:
        tk = _round_up(K, 16)                # single K step, minimal padding
    elif K % 512 == 0:
        tk = 512
    elif K % 256 == 0:
        tk = 256
    else:
        tk = 128
    Mp = _round_up(M, tm)
    Kp = _round_up(K, tk)

    ap = a if (Mp == M and Kp == K) else jnp.pad(a, ((0, Mp - M), (0, Kp - K)))
    bp = b if (Kp == K and Np == N) else jnp.pad(b, ((0, Kp - K), (0, Np - N)))

    out = pl.pallas_call(
        _matmul_kernel,
        out_shape=jax.ShapeDtypeStruct((Mp, Np), jnp.float32),
        grid_spec=pltpu.PrefetchScalarGridSpec(
            num_scalar_prefetch=0,
            grid=(Mp // tm, Np // tn, Kp // tk),
            in_specs=[pl.BlockSpec((tm, tk), lambda i, j, k: (i, k)),
                      pl.BlockSpec((tk, tn), lambda i, j, k: (k, j))],
            out_specs=pl.BlockSpec((tm, tn), lambda i, j, k: (i, j)),
            scratch_shapes=[pltpu.VMEM((tm, tn), jnp.float32)]),
        compiler_params=pltpu.CompilerParams(
            dimension_semantics=("parallel", "parallel", "arbitrary")),
    )(ap, bp)
    return out[:M, :N]


@functools.lru_cache(maxsize=None)
def _affine_kernel(relu, has_res):
    if has_res:
        def kernel(x_ref, s_ref, b_ref, r_ref, o_ref):
            y = x_ref[...] * s_ref[...] + b_ref[...] + r_ref[...]
            if relu:
                y = jnp.maximum(y, 0.0)
            o_ref[...] = y
    else:
        def kernel(x_ref, s_ref, b_ref, o_ref):
            y = x_ref[...] * s_ref[...] + b_ref[...]
            if relu:
                y = jnp.maximum(y, 0.0)
            o_ref[...] = y
    return kernel


@functools.partial(jax.jit, static_argnames=("relu",))
def affine2d(x, scale, bias, res=None, relu=True):
    """y = [relu](x * scale + bias [+ res]); x:[M,C], scale/bias:[1,C]."""
    M, C = x.shape
    # Lane-dense repack: view [M, C<128] as [M/rep, 128] so stores are
    # full-width (scale/bias are tiled to match).
    rep = 1
    if C < 128 and 128 % C == 0 and M % (128 // C) == 0:
        rep = 128 // C
        x = x.reshape(M // rep, C * rep)
        scale = jnp.tile(scale, (1, rep))
        bias = jnp.tile(bias, (1, rep))
        if res is not None:
            res = res.reshape(M // rep, C * rep)
    M2, C2 = x.shape

    tm = 512 if M2 >= 512 else _round_up(M2, 8)
    Mp = _round_up(M2, tm)
    xp = x if Mp == M2 else jnp.pad(x, ((0, Mp - M2), (0, 0)))
    args = [xp, scale, bias]
    in_specs = [pl.BlockSpec((tm, C2), lambda i: (i, 0)),
                pl.BlockSpec((1, C2), lambda i: (0, 0)),
                pl.BlockSpec((1, C2), lambda i: (0, 0))]
    if res is not None:
        rp = res if Mp == M2 else jnp.pad(res, ((0, Mp - M2), (0, 0)))
        args.append(rp)
        in_specs.append(pl.BlockSpec((tm, C2), lambda i: (i, 0)))
    out = pl.pallas_call(
        _affine_kernel(relu, res is not None),
        out_shape=jax.ShapeDtypeStruct((Mp, C2), jnp.float32),
        grid_spec=pltpu.PrefetchScalarGridSpec(
            num_scalar_prefetch=0, grid=(Mp // tm,),
            in_specs=in_specs,
            out_specs=pl.BlockSpec((tm, C2), lambda i: (i, 0))),
        compiler_params=pltpu.CompilerParams(
            dimension_semantics=("parallel",)),
    )(*args)
    out = out[:M2]
    if rep > 1:
        out = out.reshape(M, C)
    return out


def _maxpool_kernel(p_ref, o_ref):
    o_ref[...] = jnp.max(p_ref[...], axis=0)


@jax.jit
def maxpool3x3s2(x):
    """MaxPool2d(kernel=3, stride=2, padding=1) on NHWC."""
    B, H, W, C = x.shape
    OH = (H + 2 - 3) // 2 + 1
    OW = (W + 2 - 3) // 2 + 1
    xp = jnp.pad(x, ((0, 0), (1, 1), (1, 1), (0, 0)),
                 constant_values=-jnp.inf)
    cols = [xp[:, i:i + 2 * OH:2, j:j + 2 * OW:2, :]
            for i in range(3) for j in range(3)]
    p = jnp.stack(cols, axis=0)                       # [9, B, OH, OW, C]
    total = B * OH * OW * C
    L = 128 if total % 128 == 0 else C                # lane-dense view
    R = total // L
    p = p.reshape(9, R, L)
    tm = 512 if R >= 512 else _round_up(R, 8)
    Rp = _round_up(R, tm)
    if Rp != R:
        p = jnp.pad(p, ((0, 0), (0, Rp - R), (0, 0)))
    out = pl.pallas_call(
        _maxpool_kernel,
        out_shape=jax.ShapeDtypeStruct((Rp, L), jnp.float32),
        grid_spec=pltpu.PrefetchScalarGridSpec(
            num_scalar_prefetch=0, grid=(Rp // tm,),
            in_specs=[pl.BlockSpec((9, tm, L), lambda i: (0, i, 0))],
            out_specs=pl.BlockSpec((tm, L), lambda i: (i, 0))),
        compiler_params=pltpu.CompilerParams(
            dimension_semantics=("parallel",)),
    )(p)
    return out[:R].reshape(B, OH, OW, C)


# --------------------------- JAX glue (layout only) ---------------------------

def _im2col(x, kh, kw, stride, padding):
    B, H, W, C = x.shape
    xp = jnp.pad(x, ((0, 0), (padding, padding), (padding, padding), (0, 0)))
    OH = (H + 2 * padding - kh) // stride + 1
    OW = (W + 2 * padding - kw) // stride + 1
    cols = [xp[:, i:i + stride * OH:stride, j:j + stride * OW:stride, :]
            for i in range(kh) for j in range(kw)]
    p = jnp.stack(cols, axis=3)                  # [B, OH, OW, kh*kw, C]
    return p.reshape(B * OH * OW, kh * kw * C), OH, OW


def conv2d(x, w, stride, padding):
    """x: NHWC, w: HWIO [KH, KW, CIN, COUT]; bias-free conv."""
    B = x.shape[0]
    KH, KW, CI, CO = w.shape
    # TODO(synk): im2col patches are still materialized in HBM (in bf16);
    # fully folding the 9-tap loop into the matmul reduction grid is a
    # further optimization.
    patches, OH, OW = _im2col(x.astype(jnp.bfloat16), KH, KW, stride, padding)
    y = pallas_matmul(patches, w.reshape(KH * KW * CI, CO))
    return y.reshape(B, OH, OW, CO)


def conv_transpose2d(x, w, stride=2, padding=1, output_padding=1):
    """ConvTranspose2d(k=3, s=2, p=1, op=1) as zero-dilation + stride-1 conv.
    `w` is stored directly in the equivalent-conv HWIO form (spatially
    flipped, in/out swapped)."""
    B, H, W, C = x.shape
    k = w.shape[0]
    x = x.astype(jnp.bfloat16)
    xd = jnp.zeros((B, (H - 1) * stride + 1, (W - 1) * stride + 1, C), x.dtype)
    xd = xd.at[:, ::stride, ::stride, :].set(x)
    pt = k - 1 - padding
    pb = k - 1 - padding + output_padding
    xd = jnp.pad(xd, ((0, 0), (pt, pb), (pt, pb), (0, 0)))
    return conv2d(xd, w, stride=1, padding=0)


def affine_nhwc(x, scale, bias, res=None, relu=True):
    B, H, W, C = x.shape
    r = None if res is None else res.reshape(-1, C)
    return affine2d(x.reshape(-1, C), scale, bias, r,
                    relu=relu).reshape(B, H, W, C)


# ------------------------------- parameters -------------------------------

def _bn_fold(c, eps=1e-5):
    # eval-mode BatchNorm with default stats: gamma=1, beta=0, mean=0, var=1.
    gamma = jnp.ones((c,), jnp.float32)
    beta = jnp.zeros((c,), jnp.float32)
    mean = jnp.zeros((c,), jnp.float32)
    var = jnp.ones((c,), jnp.float32)
    scale = gamma / jnp.sqrt(var + eps)
    bias = beta - mean * scale
    return scale.reshape(1, c), bias.reshape(1, c)


def _kaiming_hwio(key, kh, kw, cin, cout):
    fan_in = kh * kw * cin
    w = (jax.random.normal(key, (kh, kw, cin, cout), jnp.float32)
         * jnp.sqrt(2.0 / fan_in))
    return w.astype(jnp.bfloat16)


def init_params(key, img_h, img_w):
    keys = iter(jax.random.split(key, 64))
    p = {}
    # init_block (ResNet34 stem)
    p['conv1'] = _kaiming_hwio(next(keys), 7, 7, 3, 64)
    p['bn1'] = _bn_fold(64)

    def make_layer(cin, cout, n_blocks, stride):
        blocks = []
        for b in range(n_blocks):
            s = stride if b == 0 else 1
            ci = cin if b == 0 else cout
            blk = {'stride': s,
                   'w1': _kaiming_hwio(next(keys), 3, 3, ci, cout),
                   'bn1': _bn_fold(cout),
                   'w2': _kaiming_hwio(next(keys), 3, 3, cout, cout),
                   'bn2': _bn_fold(cout)}
            if s != 1 or ci != cout:
                blk['wd'] = _kaiming_hwio(next(keys), 1, 1, ci, cout)
                blk['bnd'] = _bn_fold(cout)
            blocks.append(blk)
        return blocks

    p['layer1'] = make_layer(64, 64, 3, 1)
    p['layer2'] = make_layer(64, 128, 4, 2)
    p['layer3'] = make_layer(128, 256, 6, 2)
    p['layer4'] = make_layer(256, 512, 3, 2)
    # decoder (sum_mode=False channel counts); deconv weights generated
    # directly in their equivalent-conv HWIO form.
    p['deconv1'] = _kaiming_hwio(next(keys), 3, 3, 512, 256)
    p['deconv2'] = _kaiming_hwio(next(keys), 3, 3, 512, 128)
    p['deconv3'] = _kaiming_hwio(next(keys), 3, 3, 256, 64)
    p['conv_block'] = _kaiming_hwio(next(keys), 3, 3, 128, 32)
    # FC heads: input dim = (H/4)*(W/4)*32 (56*56*32 for 224x224 inputs).
    fc_in = (img_h // 4) * (img_w // 4) * 32
    p['fc1_w'] = ((jax.random.normal(next(keys), (fc_in, 1024), jnp.float32)
                   * jnp.sqrt(2.0 / fc_in)).astype(jnp.bfloat16))
    p['fc1_b'] = jnp.zeros((1, 1024), jnp.float32)
    w_trans = (jax.random.normal(next(keys), (1024, 3), jnp.float32)
               * jnp.sqrt(2.0 / 1024))
    w_rot = (jax.random.normal(next(keys), (1024, 4), jnp.float32)
             * jnp.sqrt(2.0 / 1024))
    p['fc_pose_w'] = jnp.concatenate([w_trans, w_rot],
                                     axis=1).astype(jnp.bfloat16)
    p['fc_pose_b'] = jnp.zeros((1, 7), jnp.float32)
    p['ones_1024'] = jnp.ones((1, 1024), jnp.float32)
    p['ones_7'] = jnp.ones((1, 7), jnp.float32)
    return p


# -------------------------------- forward --------------------------------

def basic_block(x, blk):
    s = blk['stride']
    out = conv2d(x, blk['w1'], s, 1)
    out = affine_nhwc(out, *blk['bn1'], relu=True)           # bn1 + relu
    out = conv2d(out, blk['w2'], 1, 1)
    if 'wd' in blk:
        identity = conv2d(x, blk['wd'], s, 0)
        identity = affine_nhwc(identity, *blk['bnd'], relu=False)
    else:
        identity = x
    return affine_nhwc(out, *blk['bn2'], res=identity, relu=True)  # bn2+add+relu


def hourglass_forward(x_nchw, p):
    x = jnp.transpose(x_nchw, (0, 2, 3, 1))                  # NCHW -> NHWC
    # init_block: conv7x7/2 -> BN -> ReLU -> maxpool3x3/2
    x = conv2d(x, p['conv1'], 2, 3)
    x = affine_nhwc(x, *p['bn1'], relu=True)
    x = maxpool3x3s2(x)
    r1 = x
    for blk in p['layer1']:
        r1 = basic_block(r1, blk)                            # H/4,  64ch
    r2 = r1
    for blk in p['layer2']:
        r2 = basic_block(r2, blk)                            # H/8,  128ch
    r3 = r2
    for blk in p['layer3']:
        r3 = basic_block(r3, blk)                            # H/16, 256ch
    r4 = r3
    for blk in p['layer4']:
        r4 = basic_block(r4, blk)                            # H/32, 512ch
    # TODO(synk): zero-stuffed deconv kept (correctness-verified); 4-phase
    # sub-pixel decomposition would avoid the 75%-zero dilated tensor.
    d1 = conv_transpose2d(r4, p['deconv1'])                  # H/16, 256ch
    d1 = jnp.concatenate([r3, d1], axis=-1)                  # cat(x_res3, deconv1)
    d2 = conv_transpose2d(d1, p['deconv2'])                  # H/8,  128ch
    d2 = jnp.concatenate([r2, d2], axis=-1)
    d3 = conv_transpose2d(d2, p['deconv3'])                  # H/4,  64ch
    d3 = jnp.concatenate([r1, d3], axis=-1)
    xc = conv2d(d3, p['conv_block'], 1, 1)                   # H/4,  32ch
    B = xc.shape[0]
    # PyTorch flattens NCHW: (B, C, H, W) -> (B, C*H*W)
    flat = jnp.transpose(xc, (0, 3, 1, 2)).reshape(B, -1)
    h = pallas_matmul(flat, p['fc1_w'])
    h = affine2d(h, p['ones_1024'], p['fc1_b'], relu=True)   # bias + ReLU
    # TODO(synk): F.dropout implemented as eval-mode identity (training-mode
    # dropout RNG has no reproducible Pallas equivalent here).
    pose = pallas_matmul(h, p['fc_pose_w'])                  # fc_trans ++ fc_rot
    pose = affine2d(pose, p['ones_7'], p['fc_pose_b'], relu=False)
    return pose                                              # [B, 7]


if __name__ == "__main__":
    key = jax.random.PRNGKey(0)
    pkey, xkey = jax.random.split(key)
    H = W = 64            # small, structurally-consistent demo size (224/3.5)
    params = init_params(pkey, H, W)
    x = jax.random.normal(xkey, (2, 3, H, W), jnp.float32)
    pose = hourglass_forward(x, params)
    pose = jax.block_until_ready(pose)
    assert pose.shape == (2, 7) and pose.dtype == jnp.float32
    print("KERNEL_OK")
</pallas_src>

<mosaic_0001>
module attributes {stable_mosaic.version = 11 : i64} {
  func.func @_matmul_kernel(%arg0: i32, %arg1: i32, %arg2: i32, %arg3: memref<256x160xbf16, #tpu.memory_space<vmem>>, %arg4: memref<160x128xbf16, #tpu.memory_space<vmem>>, %arg5: memref<256x128xf32, #tpu.memory_space<vmem>>, %arg6: memref<256x128xf32, #tpu.memory_space<vmem>>) attributes {dimension_semantics = [#tpu.dimension_semantics<parallel>, #tpu.dimension_semantics<parallel>, #tpu.dimension_semantics<arbitrary>], iteration_bounds = array<i64: 8, 1, 1>, scalar_prefetch = 0 : i64, scratch_operands = 1 : i64, tpu.core_type = #tpu.core_type<tc>, window_params = [{transform_indices = @transform_0, window_bounds = array<i64: 256, 160>}, {transform_indices = @transform_1, window_bounds = array<i64: 160, 128>}, {transform_indices = @transform_2, window_bounds = array<i64: 256, 128>}]} {
    %c0_i32 = arith.constant 0 : i32
    %0 = arith.cmpi eq, %arg2, %c0_i32 : i32
    %1 = arith.extui %0 : i1 to i32
    %c0_i32_0 = arith.constant 0 : i32
    %2 = arith.cmpi ne, %1, %c0_i32_0 : i32
    scf.if %2 {
      %cst_10 = arith.constant 0.000000e+00 : f32
      %12 = vector.broadcast %cst_10 : f32 to vector<256x128xf32>
      %c0_11 = arith.constant 0 : index
      %c0_12 = arith.constant 0 : index
      %13 = vector.load %arg6[%c0_11, %c0_12] : memref<256x128xf32, #tpu.memory_space<vmem>>, vector<256x128xf32>
      tpu.vector_store %arg6[%c0_11, %c0_12], %12 {strides = array<i32>} : memref<256x128xf32, #tpu.memory_space<vmem>>, vector<256x128xf32>,
    } else {
    }
    %c0 = arith.constant 0 : index
    %c0_1 = arith.constant 0 : index
    %3 = vector.load %arg6[%c0, %c0_1] : memref<256x128xf32, #tpu.memory_space<vmem>>, vector<256x128xf32>
    %c0_2 = arith.constant 0 : index
    %c0_3 = arith.constant 0 : index
    %4 = vector.load %arg3[%c0_2, %c0_3] : memref<256x160xbf16, #tpu.memory_space<vmem>>, vector<256x160xbf16>
    %c0_4 = arith.constant 0 : index
    %c0_5 = arith.constant 0 : index
    %5 = vector.load %arg4[%c0_4, %c0_5] : memref<160x128xbf16, #tpu.memory_space<vmem>>, vector<160x128xbf16>
    %cst = arith.constant dense<0.000000e+00> : vector<256x128xf32>
    %6 = tpu.matmul %4, %5, %cst {dimension_numbers = #tpu.dot_dimension_numbers<[1], [0], [0], [1], [0, 0, 1, 1], [], []>} : vector<256x160xbf16>, vector<160x128xbf16>, vector<256x128xf32> -> vector<256x128xf32>
    %7 = arith.addf %3, %6 : vector<256x128xf32>
    %c0_6 = arith.constant 0 : index
    %c0_7 = arith.constant 0 : index
    %8 = vector.load %arg6[%c0_6, %c0_7] : memref<256x128xf32, #tpu.memory_space<vmem>>, vector<256x128xf32>
    tpu.vector_store %arg6[%c0_6, %c0_7], %7 {strides = array<i32>} : memref<256x128xf32, #tpu.memory_space<vmem>>, vector<256x128xf32>,
    %c0_i32_8 = arith.constant 0 : i32
    %9 = arith.cmpi eq, %arg2, %c0_i32_8 : i32
    %10 = arith.extui %9 : i1 to i32
    %c0_i32_9 = arith.constant 0 : i32
    %11 = arith.cmpi ne, %10, %c0_i32_9 : i32
    scf.if %11 {
      %c0_10 = arith.constant 0 : index
      %c0_11 = arith.constant 0 : index
      %12 = vector.load %arg6[%c0_10, %c0_11] : memref<256x128xf32, #tpu.memory_space<vmem>>, vector<256x128xf32>
      %c0_12 = arith.constant 0 : index
      %c0_13 = arith.constant 0 : index
      %13 = vector.load %arg5[%c0_12, %c0_13] : memref<256x128xf32, #tpu.memory_space<vmem>>, vector<256x128xf32>
      tpu.vector_store %arg5[%c0_12, %c0_13], %12 {strides = array<i32>} : memref<256x128xf32, #tpu.memory_space<vmem>>, vector<256x128xf32>,
    } else {
    }
    return
  }
  func.func @transform_0(%arg0: i32, %arg1: i32, %arg2: i32) -> (i32, i32) {
    %c0_i32 = arith.constant 0 : i32
    return %arg0, %arg2 : i32, i32
  }
  func.func @transform_1(%arg0: i32, %arg1: i32, %arg2: i32) -> (i32, i32) {
    %c0_i32 = arith.constant 0 : i32
    return %arg2, %arg1 : i32, i32
  }
  func.func @transform_2(%arg0: i32, %arg1: i32, %arg2: i32) -> (i32, i32) {
    %c0_i32 = arith.constant 0 : i32
    return %arg0, %arg1 : i32, i32
  }
}

</mosaic_0001>

<llo_original>
// kernel: pallas_matmul.1
$region0: #{pallas_matmul.1}
  #allocation0 [shape = 'u32[]', space=smem, size = 0x4, offset = 0x4, fixed_abs, tag = 'smem constant byte address 0x4 - core index']
  #allocation1 [shape = 'u32[144,128]{1,0:T(1,128)}', space=vmem, size = 0x12000, scoped, tag = 'internal scratch']
  #allocation2 [shape = 'f32[256,128]{1,0:T(8,128)}', space=vmem, size = 0x20000, scoped, tag = 'scratch operand']
  %s0 = inlined_call_operand.vmem [shape: bf16[2048,160], index: 0, kind: input, shape index: {}]
  %s1 = inlined_call_operand.vmem [shape: bf16[160,128], index: 1, kind: input, shape index: {}]
  %s2 = inlined_call_operand.vmem [shape: f32[2048,128], index: 2, kind: output, shape index: {}]
  %s3 = sld [smem:[#allocation0]]
  $region49: #{pallas_matmul.1} parent=0
    _
  %s5 = ssub.s32 1, %s3
  %s6 = scalar_select 0, %s5, %s3
  loop: start=0, step=1, limit=10
  $region2: #{pallas_matmul.1} parent=0 // loop_pre_header
    _
  $region3: #{pallas_matmul.1} parent=0 // loop_header
    %s8 = sphi 0, %s12
    %p9 = scmp.ge.s32.totalorder %s8, 10
    %s15 = sphi 0, %s34
    %s16 = sphi 0, %s30
    %s17 = sphi 0, %s26
    %s18 = sphi 0, %s15
    %s19 = sphi 0, %s16
    %s20 = sphi 0, %s17
    %s21 = sphi 0, %s18
    %s22 = sphi 0, %s19
    %s23 = sphi 0, %s20
    %s39 = sphi 0, %s41
    %s42 = sphi 0, %s39
    %s43 = sphi 0, %s42
    %s59 = sphi 0, %s43
    %s67 = sphi 0, %s69
    %s70 = sphi 0, %s67
    %s71 = sphi 0, %s70
    %s87 = sphi 0, %s71
    %s95 = sphi 0, %s97
    %s98 = sphi 0, %s95
    %s99 = sphi 0, %s98
    %s115 = sphi 0, %s99
  $region4: #{pallas_matmul.1} parent=0 // loop_header_branch
    %11 = sbr.rel (%p9) target = $region8
  $region5: #{pallas_matmul.1} parent=0 // loop_body
    %s13 = ssub.s32 %s8, 1
    %s14 = ssub.s32 %s8, 2
    %s24 = sadd.s32 1, %s17
    %p25 = scmp.ge.s32.totalorder %s24, 1
    %s26 = scalar_select %p25, 0, %s24
    %s27 = sadd.s32 1, %s16
    %s28 = scalar_select %p25, %s27, %s16
    %p29 = scmp.ge.s32.totalorder %s28, 1
    %s30 = scalar_select %p29, 0, %s28
    %s31 = sadd.s32 1, %s15
    %s32 = scalar_select %p29, %s31, %s15
    %p33 = scmp.ge.s32.totalorder %s32, 8
    %s34 = scalar_select %p33, 0, %s32
    %s35 = ssub.s32 %s15, %s34
    %s36 = ssub.s32 %s17, %s26
    %s37 = sor.u32 %s35, %s36
    %p38 = scmp.eq.s32.totalorder %s37, 0
    %s40 = sadd.s32 %s39, 1
    %s41 = scalar_select %p38, %s39, %s40
    %p44 = pneg %p38
    %p45 = scmp.eq.s32.totalorder %s8, 7
    %p46 = por %p44, %p45
    %p47 = scmp.ne.s32.totalorder %s39, %s42
    %p48 = scmp.eq.s32.totalorder %s8, 0
    %p49 = por %p47, %p48
    %p50 = scmp.ne.s32.totalorder %s39, %s42
    %p51 = scmp.eq.s32.totalorder %s13, 7
    %p52 = por %p50, %p51
    %p53 = scmp.ne.s32.totalorder %s42, %s43
    %p54 = scmp.eq.s32.totalorder %s13, 0
    %p55 = por %p53, %p54
    %p56 = scmp.ne.s32.totalorder %s42, %s43
    %p57 = scmp.eq.s32.totalorder %s14, 7
    %p58 = por %p56, %p57
    %p60 = scmp.ne.s32.totalorder %s43, %s59
    %p61 = scmp.eq.s32.totalorder %s14, 0
    %p62 = por %p60, %p61
    %s63 = ssub.s32 %s17, %s26
    %s64 = ssub.s32 %s16, %s30
    %s65 = sor.u32 %s63, %s64
    %p66 = scmp.eq.s32.totalorder %s65, 0
    %s68 = sadd.s32 %s67, 1
    %s69 = scalar_select %p66, %s67, %s68
    %p72 = pneg %p66
    %p73 = scmp.eq.s32.totalorder %s8, 7
    %p74 = por %p72, %p73
    %p75 = scmp.ne.s32.totalorder %s67, %s70
    %p76 = scmp.eq.s32.totalorder %s8, 0
    %p77 = por %p75, %p76
    %p78 = scmp.ne.s32.totalorder %s67, %s70
    %p79 = scmp.eq.s32.totalorder %s13, 7
    %p80 = por %p78, %p79
    %p81 = scmp.ne.s32.totalorder %s70, %s71
    %p82 = scmp.eq.s32.totalorder %s13, 0
    %p83 = por %p81, %p82
    %p84 = scmp.ne.s32.totalorder %s70, %s71
    %p85 = scmp.eq.s32.totalorder %s14, 7
    %p86 = por %p84, %p85
    %p88 = scmp.ne.s32.totalorder %s71, %s87
    %p89 = scmp.eq.s32.totalorder %s14, 0
    %p90 = por %p88, %p89
    %s91 = ssub.s32 %s15, %s34
    %s92 = ssub.s32 %s16, %s30
    %s93 = sor.u32 %s91, %s92
    %p94 = scmp.eq.s32.totalorder %s93, 0
    %s96 = sadd.s32 %s95, 1
    %s97 = scalar_select %p94, %s95, %s96
    %p100 = pneg %p94
    %p101 = scmp.eq.s32.totalorder %s8, 7
    %p102 = por %p100, %p101
    %p103 = scmp.ne.s32.totalorder %s95, %s98
    %p104 = scmp.eq.s32.totalorder %s8, 0
    %p105 = por %p103, %p104
    %p106 = scmp.ne.s32.totalorder %s95, %s98
    %p107 = scmp.eq.s32.totalorder %s13, 7
    %p108 = por %p106, %p107
    %p109 = scmp.ne.s32.totalorder %s98, %s99
    %p110 = scmp.eq.s32.totalorder %s13, 0
    %p111 = por %p109, %p110
    %p112 = scmp.ne.s32.totalorder %s98, %s99
    %p113 = scmp.eq.s32.totalorder %s14, 7
    %p114 = por %p112, %p113
    %p116 = scmp.ne.s32.totalorder %s99, %s115
    %p117 = scmp.eq.s32.totalorder %s14, 0
    %p118 = por %p116, %p117
    %p119 = scmp.le.s32.totalorder 1, %s8
    %p120 = scmp.lt.s32.totalorder %s8, 9
    %p121 = pnand %p119, %p120
    %p122 = pneg %p121
    // Predicated region
    $region9: #{pallas_matmul.1} parent=5 // pred_check
      _
    $region10: #{pallas_matmul.1} parent=5 // pred_check_branch
      %124 = sbr.rel (%p121) target = $region12
    $region11: #{pallas_matmul.1} parent=5 // pred_region
      %s125 = ssub.s32 %s8, 1
      // Predicated region
      $region13: #{pallas_matmul.1} parent=11 // pred_check
        %p126 = pneg %p83
      $region14: #{pallas_matmul.1} parent=11 // pred_check_branch
        %128 = sbr.rel (%p126) target = $region16
      $region15: #{pallas_matmul.1} parent=11 // pred_region
        %s129 = smul.u32 20, %s20
        %p130 = scmp.lt.s32.totalorder %s129, 19
        %s131 = scalar_select %p130, %s129, 19
        %p132 = scmp.lt.s32.totalorder %s19, 0
        %s133 = scalar_select %p132, %s19, 0
        %s134 = sadd.s32 %s133, %s131
        %s135 = smul.addr %s134, 4
        %s136 = scalar_lea.vmem %s1, %s135
        %s137 = smul.u32 20, %s20
      $region16: #{pallas_matmul.1} parent=11 // pred_fallthru
        _
    $region12: #{pallas_matmul.1} parent=5 // pred_fallthru
      _
    %p138 = scmp.lt.s32.totalorder %s8, 8
    // Predicated region
    $region17: #{pallas_matmul.1} parent=5 // pred_check
      %p139 = pneg %p138
    $region18: #{pallas_matmul.1} parent=5 // pred_check_branch
      %141 = sbr.rel (%p139) target = $region20
    $region19: #{pallas_matmul.1} parent=5 // pred_region
      // Predicated region
      $region21: #{pallas_matmul.1} parent=19 // pred_check
        %p142 = pneg %p49
      $region22: #{pallas_matmul.1} parent=19 // pred_check_branch
        %144 = sbr.rel (%p142) target = $region24
      $region23: #{pallas_matmul.1} parent=19 // pred_region
        %s145 = smul.u32 32, %s15
        %s146 = smul.u32 2, %s17
        %p147 = scmp.lt.s32.totalorder %s145, 255
        %s148 = scalar_select %p147, %s145, 255
        %p149 = scmp.lt.s32.totalorder %s146, 1
        %s150 = scalar_select %p149, %s146, 1
        %s151 = smul.addr %s148, 2
        %s152 = sadd.s32 %s150, %s151
        %s153 = smul.addr %s152, 4
        %s154 = scalar_lea.vmem %s0, %s153
        %s155 = smul.u32 32, %s15
        %s156 = smul.u32 2, %s17
      $region24: #{pallas_matmul.1} parent=19 // pred_fallthru
        _
    $region20: #{pallas_matmul.1} parent=5 // pred_fallthru
      _
    %p157 = scmp.le.s32.totalorder 1, %s8
    %p158 = scmp.lt.s32.totalorder %s8, 9
    %p159 = pnand %p157, %p158
    %p160 = pneg %p159
    // Predicated region
    $region25: #{pallas_matmul.1} parent=5 // pred_check
      _
    $region26: #{pallas_matmul.1} parent=5 // pred_check_branch
      %162 = sbr.rel (%p159) target = $region28
    $region27: #{pallas_matmul.1} parent=5 // pred_region
      %s163 = ssub.s32 %s8, 1
      %s164 = smul.u32 32, %s18
      %s165 = smul.u32 2, %s20
      %p166 = scmp.lt.s32.totalorder %s164, 255
      %s167 = scalar_select %p166, %s164, 255
      %p168 = scmp.lt.s32.totalorder %s165, 1
      %s169 = scalar_select %p168, %s165, 1
      %s170 = smul.addr %s167, 2
      %s171 = sadd.s32 %s169, %s170
      %s172 = smul.addr %s171, 4
      %s173 = scalar_lea.vmem %s0, %s172
      %p174 = pneg %p55
      %p175 = pneg %p52
      %s176 = smul.u32 20, %s20
      %p177 = scmp.lt.s32.totalorder %s176, 19
      %s178 = scalar_select %p177, %s176, 19
      %p179 = scmp.lt.s32.totalorder %s19, 0
      %s180 = scalar_select %p179, %s19, 0
      %s181 = sadd.s32 %s180, %s178
      %s182 = smul.addr %s181, 4
      %s183 = scalar_lea.vmem %s1, %s182
      %p184 = pneg %p83
      %p185 = pneg %p80
      %p186 = pneg %p111
      %p187 = pneg %p108
      %s188 = smul.u32 32, %s18
      %p189 = scmp.lt.s32.totalorder %s188, 255
      %s190 = scalar_select %p189, %s188, 255
      %p191 = scmp.lt.s32.totalorder %s19, 0
      %s192 = scalar_select %p191, %s19, 0
      %s193 = sadd.s32 %s192, %s190
      %s194 = smul.addr %s193, 8
      %s195 = scalar_lea.vmem %s2, %s194
      %s196 = smul.u32 32, %s18
      %s197 = smul.u32 2, %s20
      %p198 = scmp.lt.s32.totalorder %s196, 255
      %s199 = scalar_select %p198, %s196, 255
      %p200 = scmp.lt.s32.totalorder %s197, 1
      %s201 = scalar_select %p200, %s197, 1
      %s202 = smul.addr %s199, 2
      %s203 = sadd.s32 %s201, %s202
      %s204 = smul.addr %s203, 4
      %s205 = scalar_lea.vmem %s0, %s204
      %s206 = smul.u32 32, %s18
      %s207 = smul.u32 2, %s20
      %s208 = smul.u32 20, %s20
      %p209 = scmp.lt.s32.totalorder %s208, 19
      %s210 = scalar_select %p209, %s208, 19
      %p211 = scmp.lt.s32.totalorder %s19, 0
      %s212 = scalar_select %p211, %s19, 0
      %s213 = sadd.s32 %s212, %s210
      %s214 = smul.addr %s213, 4
      %s215 = scalar_lea.vmem %s1, %s214
      %s216 = smul.u32 20, %s20
      %s217 = smul.u32 32, %s18
      %p218 = scmp.lt.s32.totalorder %s217, 255
      %s219 = scalar_select %p218, %s217, 255
      %p220 = scmp.lt.s32.totalorder %s19, 0
      %s221 = scalar_select %p220, %s19, 0
      %s222 = sadd.s32 %s221, %s219
      %s223 = smul.addr %s222, 8
      %s224 = scalar_lea.vmem %s2, %s223
      %s225 = smul.u32 32, %s18
      %p227 = scmp.eq.s32.totalorder %s20, 0
      // Predicated region
      $region29: #{pallas_matmul.1} parent=27 // pred_check
        %p228 = pneg %p227
      $region30: #{pallas_matmul.1} parent=27 // pred_check_branch
        %230 = sbr.rel (%p228) target = $region32
      $region31: #{pallas_matmul.1} parent=27 // pred_region
        %231 = vst [vmem:[#allocation2] sm:$0xff] 0.0
        %232 = vst [vmem:[#allocation2 + $0x8] sm:$0xff] 0.0
        %233 = vst [vmem:[#allocation2 + $0x10] sm:$0xff] 0.0
        %234 = vst [vmem:[#allocation2 + $0x18] sm:$0xff] 0.0
        %235 = vst [vmem:[#allocation2 + $0x20] sm:$0xff] 0.0
        %236 = vst [vmem:[#allocation2 + $0x28] sm:$0xff] 0.0
        %237 = vst [vmem:[#allocation2 + $0x30] sm:$0xff] 0.0
        %238 = vst [vmem:[#allocation2 + $0x38] sm:$0xff] 0.0
        %239 = vst [vmem:[#allocation2 + $0x40] sm:$0xff] 0.0
        %240 = vst [vmem:[#allocation2 + $0x48] sm:$0xff] 0.0
        %241 = vst [vmem:[#allocation2 + $0x50] sm:$0xff] 0.0
        %242 = vst [vmem:[#allocation2 + $0x58] sm:$0xff] 0.0
        %243 = vst [vmem:[#allocation2 + $0x60] sm:$0xff] 0.0
        %244 = vst [vmem:[#allocation2 + $0x68] sm:$0xff] 0.0
        %245 = vst [vmem:[#allocation2 + $0x70] sm:$0xff] 0.0
        %246 = vst [vmem:[#allocation2 + $0x78] sm:$0xff] 0.0
        %247 = vst [vmem:[#allocation2 + $0x80] sm:$0xff] 0.0
        %248 = vst [vmem:[#allocation2 + $0x88] sm:$0xff] 0.0
        %249 = vst [vmem:[#allocation2 + $0x90] sm:$0xff] 0.0
        %250 = vst [vmem:[#allocation2 + $0x98] sm:$0xff] 0.0
        %251 = vst [vmem:[#allocation2 + $0xa0] sm:$0xff] 0.0
        %252 = vst [vmem:[#allocation2 + $0xa8] sm:$0xff] 0.0
        %253 = vst [vmem:[#allocation2 + $0xb0] sm:$0xff] 0.0
        %254 = vst [vmem:[#allocation2 + $0xb8] sm:$0xff] 0.0
        %255 = vst [vmem:[#allocation2 + $0xc0] sm:$0xff] 0.0
        %256 = vst [vmem:[#allocation2 + $0xc8] sm:$0xff] 0.0
        %257 = vst [vmem:[#allocation2 + $0xd0] sm:$0xff] 0.0
        %258 = vst [vmem:[#allocation2 + $0xd8] sm:$0xff] 0.0
        %259 = vst [vmem:[#allocation2 + $0xe0] sm:$0xff] 0.0
        %260 = vst [vmem:[#allocation2 + $0xe8] sm:$0xff] 0.0
        %261 = vst [vmem:[#allocation2 + $0xf0] sm:$0xff] 0.0
        %262 = vst [vmem:[#allocation2 + $0xf8] sm:$0xff] 0.0
      $region32: #{pallas_matmul.1} parent=27 // pred_fallthru
        _
      %v263 = vld [vmem:[#allocation2] sm:$0xff]
      %v264 = vld [vmem:[#allocation2 + $0x8] sm:$0xff]
      %v265 = vld [vmem:[#allocation2 + $0x10] sm:$0xff]
      %v266 = vld [vmem:[#allocation2 + $0x18] sm:$0xff]
      %v267 = vld [vmem:[#allocation2 + $0x20] sm:$0xff]
      %v268 = vld [vmem:[#allocation2 + $0x28] sm:$0xff]
      %v269 = vld [vmem:[#allocation2 + $0x30] sm:$0xff]
      %v270 = vld [vmem:[#allocation2 + $0x38] sm:$0xff]
      %v271 = vld [vmem:[#allocation2 + $0x40] sm:$0xff]
      %v272 = vld [vmem:[#allocation2 + $0x48] sm:$0xff]
      %v273 = vld [vmem:[#allocation2 + $0x50] sm:$0xff]
      %v274 = vld [vmem:[#allocation2 + $0x58] sm:$0xff]
      %v275 = vld [vmem:[#allocation2 + $0x60] sm:$0xff]
      %v276 = vld [vmem:[#allocation2 + $0x68] sm:$0xff]
      %v277 = vld [vmem:[#allocation2 + $0x70] sm:$0xff]
      %v278 = vld [vmem:[#allocation2 + $0x78] sm:$0xff]
      %v279 = vld [vmem:[#allocation2 + $0x80] sm:$0xff]
      %v280 = vld [vmem:[#allocation2 + $0x88] sm:$0xff]
      %v281 = vld [vmem:[#allocation2 + $0x90] sm:$0xff]
      %v282 = vld [vmem:[#allocation2 + $0x98] sm:$0xff]
      %v283 = vld [vmem:[#allocation2 + $0xa0] sm:$0xff]
      %v284 = vld [vmem:[#allocation2 + $0xa8] sm:$0xff]
      %v285 = vld [vmem:[#allocation2 + $0xb0] sm:$0xff]
      %v286 = vld [vmem:[#allocation2 + $0xb8] sm:$0xff]
      %v287 = vld [vmem:[#allocation2 + $0xc0] sm:$0xff]
      %v288 = vld [vmem:[#allocation2 + $0xc8] sm:$0xff]
      %v289 = vld [vmem:[#allocation2 + $0xd0] sm:$0xff]
      %v290 = vld [vmem:[#allocation2 + $0xd8] sm:$0xff]
      %v291 = vld [vmem:[#allocation2 + $0xe0] sm:$0xff]
      %v292 = vld [vmem:[#allocation2 + $0xe8] sm:$0xff]
      %v293 = vld [vmem:[#allocation2 + $0xf0] sm:$0xff]
      %v294 = vld [vmem:[#allocation2 + $0xf8] sm:$0xff]
      %v295 = vld [vmem:[%s205] sm:$0xff]
      %v296 = vld [vmem:[%s205 + $0x8] sm:$0xff]
      %v297 = vld [vmem:[%s205 + $0x10] sm:$0xff]
      %v298 = vld [vmem:[%s205 + $0x18] sm:$0xff]
      %v299 = vld [vmem:[%s205 + $0x20] sm:$0xff]
      %v300 = vld [vmem:[%s205 + $0x28] sm:$0xff]
      %v301 = vld [vmem:[%s205 + $0x30] sm:$0xff]
      %v302 = vld [vmem:[%s205 + $0x38] sm:$0xff]
      %v303 = vld [vmem:[%s205 + $0x40] sm:$0xff]
      %v304 = vld [vmem:[%s205 + $0x48] sm:$0xff]
      %v305 = vld [vmem:[%s205 + $0x50] sm:$0xff]
      %v306 = vld [vmem:[%s205 + $0x58] sm:$0xff]
      %v307 = vld [vmem:[%s205 + $0x60] sm:$0xff]
      %v308 = vld [vmem:[%s205 + $0x68] sm:$0xff]
      %v309 = vld [vmem:[%s205 + $0x70] sm:$0xff]
      %v310 = vld [vmem:[%s205 + $0x78] sm:$0xff]
      %v311 = vld [vmem:[%s205 + $0x80] sm:$0xff]
      %v312 = vld [vmem:[%s205 + $0x88] sm:$0xff]
      %v313 = vld [vmem:[%s205 + $0x90] sm:$0xff]
      %v314 = vld [vmem:[%s205 + $0x98] sm:$0xff]
      %v315 = vld [vmem:[%s205 + $0xa0] sm:$0xff]
      %v316 = vld [vmem:[%s205 + $0xa8] sm:$0xff]
      %v317 = vld [vmem:[%s205 + $0xb0] sm:$0xff]
      %v318 = vld [vmem:[%s205 + $0xb8] sm:$0xff]
      %v319 = vld [vmem:[%s205 + $0xc0] sm:$0xff]
      %v320 = vld [vmem:[%s205 + $0xc8] sm:$0xff]
      %v321 = vld [vmem:[%s205 + $0xd0] sm:$0xff]
      %v322 = vld [vmem:[%s205 + $0xd8] sm:$0xff]
      %v323 = vld [vmem:[%s205 + $0xe0] sm:$0xff]
      %v324 = vld [vmem:[%s205 + $0xe8] sm:$0xff]
      %v325 = vld [vmem:[%s205 + $0xf0] sm:$0xff]
      %v326 = vld [vmem:[%s205 + $0xf8] sm:$0xff]
      %v327 = vld [vmem:[%s215] sm:$0xf]
      %v328 = vld [vmem:[%s215 + $0x4] sm:$0xf]
      %v329 = vld [vmem:[%s215 + $0x8] sm:$0xf]
      %v330 = vld [vmem:[%s215 + $0xc] sm:$0xf]
      %v331 = vld [vmem:[%s215 + $0x10] sm:$0xf]
      %v332 = vld [vmem:[%s215 + $0x14] sm:$0xf]
      %v333 = vld [vmem:[%s215 + $0x18] sm:$0xf]
      %v334 = vld [vmem:[%s215 + $0x1c] sm:$0xf]
      %v335 = vld [vmem:[%s215 + $0x20] sm:$0xf]
      %v336 = vld [vmem:[%s215 + $0x24] sm:$0xf]
      %v337 = vld [vmem:[%s215 + $0x28] sm:$0xf]
      %v338 = vld [vmem:[%s215 + $0x2c] sm:$0xf]
      %v339 = vld [vmem:[%s215 + $0x30] sm:$0xf]
      %v340 = vld [vmem:[%s215 + $0x34] sm:$0xf]
      %v341 = vld [vmem:[%s215 + $0x38] sm:$0xf]
      %v342 = vld [vmem:[%s215 + $0x3c] sm:$0xf]
      %v343 = vld [vmem:[%s215 + $0x40] sm:$0xf]
      %v344 = vld [vmem:[%s215 + $0x44] sm:$0xf]
      %v345 = vld [vmem:[%s215 + $0x48] sm:$0xf]
      %v346 = vld [vmem:[%s215 + $0x4c] sm:$0xf]
      %v379 = vunpack.c.l.b16 %v295
      %v380 = vunpack.c.h.b16 %v295
      %v381 = vunpack.c.l.b16 %v296
      %v382 = vunpack.c.h.b16 %v296
      %v383 = vunpack.c.l.b16 %v297
      %v384 = vunpack.c.h.b16 %v297
      %v385 = vunpack.c.l.b16 %v298
      %v386 = vunpack.c.h.b16 %v298
      %v387 = vunpack.c.l.b16 %v299
      %v388 = vunpack.c.h.b16 %v299
      %v389 = vunpack.c.l.b16 %v300
      %v390 = vunpack.c.h.b16 %v300
      %v391 = vunpack.c.l.b16 %v301
      %v392 = vunpack.c.h.b16 %v301
      %v393 = vunpack.c.l.b16 %v302
      %v394 = vunpack.c.h.b16 %v302
      %v395 = vunpack.c.l.b16 %v303
      %v396 = vunpack.c.h.b16 %v303
      %v397 = vunpack.c.l.b16 %v304
      %v398 = vunpack.c.h.b16 %v304
      %v399 = vunpack.c.l.b16 %v305
      %v400 = vunpack.c.h.b16 %v305
      %v401 = vunpack.c.l.b16 %v306
      %v402 = vunpack.c.h.b16 %v306
      %v403 = vunpack.c.l.b16 %v307
      %v404 = vunpack.c.h.b16 %v307
      %v405 = vunpack.c.l.b16 %v308
      %v406 = vunpack.c.h.b16 %v308
      %v407 = vunpack.c.l.b16 %v309
      %v408 = vunpack.c.h.b16 %v309
      %v409 = vunpack.c.l.b16 %v310
      %v410 = vunpack.c.h.b16 %v310
      %v411 = vunpack.c.l.b16 %v311
      %v412 = vunpack.c.h.b16 %v311
      %v413 = vunpack.c.l.b16 %v312
      %v414 = vunpack.c.h.b16 %v312
      %v415 = vunpack.c.l.b16 %v313
      %v416 = vunpack.c.h.b16 %v313
      %v417 = vunpack.c.l.b16 %v314
      %v418 = vunpack.c.h.b16 %v314
      %v419 = vunpack.c.l.b16 %v315
      %v420 = vunpack.c.h.b16 %v315
      %v421 = vunpack.c.l.b16 %v316
      %v422 = vunpack.c.h.b16 %v316
      %v423 = vunpack.c.l.b16 %v317
      %v424 = vunpack.c.h.b16 %v317
      %v425 = vunpack.c.l.b16 %v318
      %v426 = vunpack.c.h.b16 %v318
      %v427 = vunpack.c.l.b16 %v319
      %v428 = vunpack.c.h.b16 %v319
      %v429 = vunpack.c.l.b16 %v320
      %v430 = vunpack.c.h.b16 %v320
      %v431 = vunpack.c.l.b16 %v321
      %v432 = vunpack.c.h.b16 %v321
      %v433 = vunpack.c.l.b16 %v322
      %v434 = vunpack.c.h.b16 %v322
      %v435 = vunpack.c.l.b16 %v323
      %v436 = vunpack.c.h.b16 %v323
      %v437 = vunpack.c.l.b16 %v324
      %v438 = vunpack.c.h.b16 %v324
      %v439 = vunpack.c.l.b16 %v325
      %v440 = vunpack.c.h.b16 %v325
      %v441 = vunpack.c.l.b16 %v326
      %v442 = vunpack.c.h.b16 %v326
      %v443 = vpack.c.b16 %v381, %v379
      %v444 = vpack.c.b16 %v382, %v380
      %v445 = vpack.c.b16 %v385, %v383
      %v446 = vpack.c.b16 %v386, %v384
      %v447 = vpack.c.b16 %v389, %v387
      %v448 = vpack.c.b16 %v390, %v388
      %v449 = vpack.c.b16 %v393, %v391
      %v450 = vpack.c.b16 %v394, %v392
      %v451 = vpack.c.b16 %v397, %v395
      %v452 = vpack.c.b16 %v398, %v396
      %v453 = vpack.c.b16 %v401, %v399
      %v454 = vpack.c.b16 %v402, %v400
      %v455 = vpack.c.b16 %v405, %v403
      %v456 = vpack.c.b16 %v406, %v404
      %v457 = vpack.c.b16 %v409, %v407
      %v458 = vpack.c.b16 %v410, %v408
      %v459 = vpack.c.b16 %v413, %v411
      %v460 = vpack.c.b16 %v414, %v412
      %v461 = vpack.c.b16 %v417, %v415
      %v462 = vpack.c.b16 %v418, %v416
      %v463 = vpack.c.b16 %v421, %v419
      %v464 = vpack.c.b16 %v422, %v420
      %v465 = vpack.c.b16 %v425, %v423
      %v466 = vpack.c.b16 %v426, %v424
      %v467 = vpack.c.b16 %v429, %v427
      %v468 = vpack.c.b16 %v430, %v428
      %v469 = vpack.c.b16 %v433, %v431
      %v470 = vpack.c.b16 %v434, %v432
      %v471 = vpack.c.b16 %v437, %v435
      %v472 = vpack.c.b16 %v438, %v436
      %v473 = vpack.c.b16 %v441, %v439
      %v474 = vpack.c.b16 %v442, %v440
      %v511 = vunpack.c.l.b16 %v327
      %v512 = vunpack.c.l.b16 %v328
      %v513 = vunpack.c.l.b16 %v329
      %v514 = vunpack.c.l.b16 %v330
      %v515 = vunpack.c.l.b16 %v331
      %v516 = vunpack.c.l.b16 %v332
      %v517 = vunpack.c.l.b16 %v333
      %v518 = vunpack.c.l.b16 %v334
      %v519 = vunpack.c.l.b16 %v335
      %v520 = vunpack.c.l.b16 %v336
      %v521 = vunpack.c.l.b16 %v337
      %v522 = vunpack.c.l.b16 %v338
      %v523 = vunpack.c.l.b16 %v339
      %v524 = vunpack.c.l.b16 %v340
      %v525 = vunpack.c.l.b16 %v341
      %v526 = vunpack.c.l.b16 %v342
      %v527 = vunpack.c.l.b16 %v343
      %v528 = vunpack.c.l.b16 %v344
      %v529 = vunpack.c.l.b16 %v345
      %v530 = vunpack.c.l.b16 %v346
      %v531 = vpack.c.b16 %v512, %v511
      %v532 = vpack.c.b16 %v514, %v513
      %v533 = vpack.c.b16 %v516, %v515
      %v534 = vpack.c.b16 %v518, %v517
      %v535 = vpack.c.b16 %v520, %v519
      %v536 = vpack.c.b16 %v522, %v521
      %v537 = vpack.c.b16 %v524, %v523
      %v538 = vpack.c.b16 %v526, %v525
      %v539 = vpack.c.b16 %v528, %v527
      %v540 = vpack.c.b16 %v530, %v529
      %vm551 = vcmask 261120
      %v553 = vsel %vm551, %v444, 0
      %v556 = vsel %vm551, %v446, 0
      %v559 = vsel %vm551, %v448, 0
      %v562 = vsel %vm551, %v450, 0
      %v565 = vsel %vm551, %v452, 0
      %v568 = vsel %vm551, %v454, 0
      %v571 = vsel %vm551, %v456, 0
      %v574 = vsel %vm551, %v458, 0
      %v577 = vsel %vm551, %v460, 0
      %v580 = vsel %vm551, %v462, 0
      %v583 = vsel %vm551, %v464, 0
      %v586 = vsel %vm551, %v466, 0
      %v589 = vsel %vm551, %v468, 0
      %v592 = vsel %vm551, %v470, 0
      %v595 = vsel %vm551, %v472, 0
      %v598 = vsel %vm551, %v474, 0
      %600 = vmatprep.subr.bf16.mxu0 0
      %601 = vmatpush1.bf16.msra.mxu0 %v538
      %602 = vmatprep.subr.bf16.mxu0 0
      %603 = vmatpush1.bf16.msra.mxu0 %v537
      %604 = vmatprep.subr.bf16.mxu0 0
      %605 = vmatpush1.bf16.msra.mxu0 %v536
      %606 = vmatprep.subr.bf16.mxu0 0
      %607 = vmatpush1.bf16.msra.mxu0 %v535
      %608 = vmatprep.subr.bf16.mxu0 0
      %609 = vmatpush1.bf16.msra.mxu0 %v534
      %610 = vmatprep.subr.bf16.mxu0 0
      %611 = vmatpush1.bf16.msra.mxu0 %v533
      %612 = vmatprep.subr.bf16.mxu0 0
      %613 = vmatpush1.bf16.msra.mxu0 %v532
      %614 = vmatprep.subr.bf16.mxu0 0
      %615 = vmatpush1.bf16.msra.mxu0 %v531
      %616 = vmatprep.subr.bf16.mxu0 0
      %617 = vmatpush2.bf16.msra.mxu0 0
      %618 = vmatprep.subr.bf16.mxu0 0
      %619 = vmatpush2.bf16.msra.mxu0 0
      %620 = vmatprep.subr.bf16.mxu0 0
      %621 = vmatpush2.bf16.msra.mxu0 0
      %622 = vmatprep.subr.bf16.mxu0 0
      %623 = vmatpush2.bf16.msra.mxu0 0
      %624 = vmatprep.subr.bf16.mxu0 0
      %625 = vmatpush2.bf16.msra.mxu0 0
      %626 = vmatprep.subr.bf16.mxu0 0
      %627 = vmatpush2.bf16.msra.mxu0 0
      %628 = vmatprep.subr.bf16.mxu0 0
      %629 = vmatpush2.bf16.msra.mxu0 %v540
      %630 = vmatprep.subr.bf16.mxu0 0
      %631 = vmatpush2.bf16.msra.mxu0 %v539
      %632 = vmatprep.mubr.bf16.mxu0 %v553
      %633 = vmatmul.mubr.bf16.gmra.mxu0 %v443
      %v634 = vpop.f32.mrf.mxu0
      %v635 = vadd.f32 0.0, %v634
      %v636 = vpop.f32.mrf.mxu0
      %v637 = vpop.f32.mrf.mxu0
      %v638 = vadd.f32 0.0, %v637
      %v639 = vpop.f32.mrf.mxu0
      %640 = vmatprep.mubr.bf16.mxu0 %v556
      %641 = vmatmul.mubr.bf16.gmra.mxu0 %v445
      %v642 = vpop.f32.mrf.mxu0
      %v643 = vadd.f32 0.0, %v642
      %v644 = vpop.f32.mrf.mxu0
      %v645 = vpop.f32.mrf.mxu0
      %v646 = vadd.f32 0.0, %v645
      %v647 = vpop.f32.mrf.mxu0
      %648 = vmatprep.mubr.bf16.mxu0 %v559
      %649 = vmatmul.mubr.bf16.gmra.mxu0 %v447
      %v650 = vpop.f32.mrf.mxu0
      %v651 = vadd.f32 0.0, %v650
      %v652 = vpop.f32.mrf.mxu0
      %v653 = vpop.f32.mrf.mxu0
      %v654 = vadd.f32 0.0, %v653
      %v655 = vpop.f32.mrf.mxu0
      %656 = vmatprep.mubr.bf16.mxu0 %v562
      %657 = vmatmul.mubr.bf16.gmra.mxu0 %v449
      %v658 = vpop.f32.mrf.mxu0
      %v659 = vadd.f32 0.0, %v658
      %v660 = vpop.f32.mrf.mxu0
      %v661 = vpop.f32.mrf.mxu0
      %v662 = vadd.f32 0.0, %v661
      %v663 = vpop.f32.mrf.mxu0
      %664 = vmatprep.mubr.bf16.mxu0 %v565
      %665 = vmatmul.mubr.bf16.gmra.mxu0 %v451
      %v666 = vpop.f32.mrf.mxu0
      %v667 = vadd.f32 0.0, %v666
      %v668 = vpop.f32.mrf.mxu0
      %v669 = vpop.f32.mrf.mxu0
      %v670 = vadd.f32 0.0, %v669
      %v671 = vpop.f32.mrf.mxu0
      %672 = vmatprep.mubr.bf16.mxu0 %v568
      %673 = vmatmul.mubr.bf16.gmra.mxu0 %v453
      %v674 = vpop.f32.mrf.mxu0
      %v675 = vadd.f32 0.0, %v674
      %v676 = vpop.f32.mrf.mxu0
      %v677 = vpop.f32.mrf.mxu0
      %v678 = vadd.f32 0.0, %v677
      %v679 = vpop.f32.mrf.mxu0
      %680 = vmatprep.mubr.bf16.mxu0 %v571
      %681 = vmatmul.mubr.bf16.gmra.mxu0 %v455
      %v682 = vpop.f32.mrf.mxu0
      %v683 = vadd.f32 0.0, %v682
      %v684 = vpop.f32.mrf.mxu0
      %v685 = vpop.f32.mrf.mxu0
      %v686 = vadd.f32 0.0, %v685
      %v687 = vpop.f32.mrf.mxu0
      %688 = vmatprep.mubr.bf16.mxu0 %v574
      %689 = vmatmul.mubr.bf16.gmra.mxu0 %v457
      %v690 = vpop.f32.mrf.mxu0
      %v691 = vadd.f32 0.0, %v690
      %v692 = vpop.f32.mrf.mxu0
      %v693 = vpop.f32.mrf.mxu0
      %v694 = vadd.f32 0.0, %v693
      %v695 = vpop.f32.mrf.mxu0
      %696 = vmatprep.mubr.bf16.mxu0 %v577
      %697 = vmatmul.mubr.bf16.gmra.mxu0 %v459
      %v698 = vpop.f32.mrf.mxu0
      %v699 = vadd.f32 0.0, %v698
      %v700 = vpop.f32.mrf.mxu0
      %v701 = vpop.f32.mrf.mxu0
      %v702 = vadd.f32 0.0, %v701
      %v703 = vpop.f32.mrf.mxu0
      %704 = vmatprep.mubr.bf16.mxu0 %v580
      %705 = vmatmul.mubr.bf16.gmra.mxu0 %v461
      %v706 = vpop.f32.mrf.mxu0
      %v707 = vadd.f32 0.0, %v706
      %v708 = vpop.f32.mrf.mxu0
      %v709 = vpop.f32.mrf.mxu0
      %v710 = vadd.f32 0.0, %v709
      %v711 = vpop.f32.mrf.mxu0
      %712 = vmatprep.mubr.bf16.mxu0 %v583
      %713 = vmatmul.mubr.bf16.gmra.mxu0 %v463
      %v714 = vpop.f32.mrf.mxu0
      %v715 = vadd.f32 0.0, %v714
      %v716 = vpop.f32.mrf.mxu0
      %v717 = vpop.f32.mrf.mxu0
      %v718 = vadd.f32 0.0, %v717
      %v719 = vpop.f32.mrf.mxu0
      %720 = vmatprep.mubr.bf16.mxu0 %v586
      %721 = vmatmul.mubr.bf16.gmra.mxu0 %v465
      %v722 = vpop.f32.mrf.mxu0
      %v723 = vadd.f32 0.0, %v722
      %v724 = vpop.f32.mrf.mxu0
      %v725 = vpop.f32.mrf.mxu0
      %v726 = vadd.f32 0.0, %v725
      %v727 = vpop.f32.mrf.mxu0
      %728 = vmatprep.mubr.bf16.mxu0 %v589
      %729 = vmatmul.mubr.bf16.gmra.mxu0 %v467
      %v730 = vpop.f32.mrf.mxu0
      %v731 = vadd.f32 0.0, %v730
      %v732 = vpop.f32.mrf.mxu0
      %v733 = vpop.f32.mrf.mxu0
      %v734 = vadd.f32 0.0, %v733
      %v735 = vpop.f32.mrf.mxu0
      %736 = vmatprep.mubr.bf16.mxu0 %v592
      %737 = vmatmul.mubr.bf16.gmra.mxu0 %v469
      %v738 = vpop.f32.mrf.mxu0
      %v739 = vadd.f32 0.0, %v738
      %v740 = vpop.f32.mrf.mxu0
      %v741 = vpop.f32.mrf.mxu0
      %v742 = vadd.f32 0.0, %v741
      %v743 = vpop.f32.mrf.mxu0
      %744 = vmatprep.mubr.bf16.mxu0 %v595
      %745 = vmatmul.mubr.bf16.gmra.mxu0 %v471
      %v746 = vpop.f32.mrf.mxu0
      %v747 = vadd.f32 0.0, %v746
      %v748 = vpop.f32.mrf.mxu0
      %v749 = vpop.f32.mrf.mxu0
      %v750 = vadd.f32 0.0, %v749
      %v751 = vpop.f32.mrf.mxu0
      %752 = vmatprep.mubr.bf16.mxu0 %v598
      %753 = vmatmul.mubr.bf16.gmra.mxu0 %v473
      %v754 = vpop.f32.mrf.mxu0
      %v755 = vadd.f32 0.0, %v754
      %v756 = vpop.f32.mrf.mxu0
      %v757 = vpop.f32.mrf.mxu0
      %v758 = vadd.f32 0.0, %v757
      %v759 = vpop.f32.mrf.mxu0
      %760 = vdwg.mxu0
      %v761 = vadd.f32 %v263, %v635
      %v762 = vadd.f32 %v264, %v638
      %v763 = vadd.f32 %v265, %v643
      %v764 = vadd.f32 %v266, %v646
      %v765 = vadd.f32 %v267, %v651
      %v766 = vadd.f32 %v268, %v654
      %v767 = vadd.f32 %v269, %v659
      %v768 = vadd.f32 %v270, %v662
      %v769 = vadd.f32 %v271, %v667
      %v770 = vadd.f32 %v272, %v670
      %v771 = vadd.f32 %v273, %v675
      %v772 = vadd.f32 %v274, %v678
      %v773 = vadd.f32 %v275, %v683
      %v774 = vadd.f32 %v276, %v686
      %v775 = vadd.f32 %v277, %v691
      %v776 = vadd.f32 %v278, %v694
      %v777 = vadd.f32 %v279, %v699
      %v778 = vadd.f32 %v280, %v702
      %v779 = vadd.f32 %v281, %v707
      %v780 = vadd.f32 %v282, %v710
      %v781 = vadd.f32 %v283, %v715
      %v782 = vadd.f32 %v284, %v718
      %v783 = vadd.f32 %v285, %v723
      %v784 = vadd.f32 %v286, %v726
      %v785 = vadd.f32 %v287, %v731
      %v786 = vadd.f32 %v288, %v734
      %v787 = vadd.f32 %v289, %v739
      %v788 = vadd.f32 %v290, %v742
      %v789 = vadd.f32 %v291, %v747
      %v790 = vadd.f32 %v292, %v750
      %v791 = vadd.f32 %v293, %v755
      %v792 = vadd.f32 %v294, %v758
      %793 = vst [vmem:[#allocation2] sm:$0xff] %v761
      %794 = vst [vmem:[#allocation2 + $0x8] sm:$0xff] %v762
      %795 = vst [vmem:[#allocation2 + $0x10] sm:$0xff] %v763
      %796 = vst [vmem:[#allocation2 + $0x18] sm:$0xff] %v764
      %797 = vst [vmem:[#allocation2 + $0x20] sm:$0xff] %v765
      %798 = vst [vmem:[#allocation2 + $0x28] sm:$0xff] %v766
      %799 = vst [vmem:[#allocation2 + $0x30] sm:$0xff] %v767
      %800 = vst [vmem:[#allocation2 + $0x38] sm:$0xff] %v768
      %801 = vst [vmem:[#allocation2 + $0x40] sm:$0xff] %v769
      %802 = vst [vmem:[#allocation2 + $0x48] sm:$0xff] %v770
      %803 = vst [vmem:[#allocation2 + $0x50] sm:$0xff] %v771
      %804 = vst [vmem:[#allocation2 + $0x58] sm:$0xff] %v772
      %805 = vst [vmem:[#allocation2 + $0x60] sm:$0xff] %v773
      %806 = vst [vmem:[#allocation2 + $0x68] sm:$0xff] %v774
      %807 = vst [vmem:[#allocation2 + $0x70] sm:$0xff] %v775
      %808 = vst [vmem:[#allocation2 + $0x78] sm:$0xff] %v776
      %809 = vst [vmem:[#allocation2 + $0x80] sm:$0xff] %v777
      %810 = vst [vmem:[#allocation2 + $0x88] sm:$0xff] %v778
      %811 = vst [vmem:[#allocation2 + $0x90] sm:$0xff] %v779
      %812 = vst [vmem:[#allocation2 + $0x98] sm:$0xff] %v780
      %813 = vst [vmem:[#allocation2 + $0xa0] sm:$0xff] %v781
      %814 = vst [vmem:[#allocation2 + $0xa8] sm:$0xff] %v782
      %815 = vst [vmem:[#allocation2 + $0xb0] sm:$0xff] %v783
      %816 = vst [vmem:[#allocation2 + $0xb8] sm:$0xff] %v784
      %817 = vst [vmem:[#allocation2 + $0xc0] sm:$0xff] %v785
      %818 = vst [vmem:[#allocation2 + $0xc8] sm:$0xff] %v786
      %819 = vst [vmem:[#allocation2 + $0xd0] sm:$0xff] %v787
      %820 = vst [vmem:[#allocation2 + $0xd8] sm:$0xff] %v788
      %821 = vst [vmem:[#allocation2 + $0xe0] sm:$0xff] %v789
      %822 = vst [vmem:[#allocation2 + $0xe8] sm:$0xff] %v790
      %823 = vst [vmem:[#allocation2 + $0xf0] sm:$0xff] %v791
      %824 = vst [vmem:[#allocation2 + $0xf8] sm:$0xff] %v792
      // Predicated region
      $region33: #{pallas_matmul.1} parent=27 // pred_check
        %p825 = pneg %p227
      $region34: #{pallas_matmul.1} parent=27 // pred_check_branch
        %827 = sbr.rel (%p825) target = $region36
      $region35: #{pallas_matmul.1} parent=27 // pred_region
        %v828 = vld [vmem:[#allocation2] sm:$0xff]
        %v829 = vld [vmem:[#allocation2 + $0x8] sm:$0xff]
        %v830 = vld [vmem:[#allocation2 + $0x10] sm:$0xff]
        %v831 = vld [vmem:[#allocation2 + $0x18] sm:$0xff]
        %v832 = vld [vmem:[#allocation2 + $0x20] sm:$0xff]
        %v833 = vld [vmem:[#allocation2 + $0x28] sm:$0xff]
        %v834 = vld [vmem:[#allocation2 + $0x30] sm:$0xff]
        %v835 = vld [vmem:[#allocation2 + $0x38] sm:$0xff]
        %v836 = vld [vmem:[#allocation2 + $0x40] sm:$0xff]
        %v837 = vld [vmem:[#allocation2 + $0x48] sm:$0xff]
        %v838 = vld [vmem:[#allocation2 + $0x50] sm:$0xff]
        %v839 = vld [vmem:[#allocation2 + $0x58] sm:$0xff]
        %v840 = vld [vmem:[#allocation2 + $0x60] sm:$0xff]
        %v841 = vld [vmem:[#allocation2 + $0x68] sm:$0xff]
        %v842 = vld [vmem:[#allocation2 + $0x70] sm:$0xff]
        %v843 = vld [vmem:[#allocation2 + $0x78] sm:$0xff]
        %v844 = vld [vmem:[#allocation2 + $0x80] sm:$0xff]
        %v845 = vld [vmem:[#allocation2 + $0x88] sm:$0xff]
        %v846 = vld [vmem:[#allocation2 + $0x90] sm:$0xff]
        %v847 = vld [vmem:[#allocation2 + $0x98] sm:$0xff]
        %v848 = vld [vmem:[#allocation2 + $0xa0] sm:$0xff]
        %v849 = vld [vmem:[#allocation2 + $0xa8] sm:$0xff]
        %v850 = vld [vmem:[#allocation2 + $0xb0] sm:$0xff]
        %v851 = vld [vmem:[#allocation2 + $0xb8] sm:$0xff]
        %v852 = vld [vmem:[#allocation2 + $0xc0] sm:$0xff]
        %v853 = vld [vmem:[#allocation2 + $0xc8] sm:$0xff]
        %v854 = vld [vmem:[#allocation2 + $0xd0] sm:$0xff]
        %v855 = vld [vmem:[#allocation2 + $0xd8] sm:$0xff]
        %v856 = vld [vmem:[#allocation2 + $0xe0] sm:$0xff]
        %v857 = vld [vmem:[#allocation2 + $0xe8] sm:$0xff]
        %v858 = vld [vmem:[#allocation2 + $0xf0] sm:$0xff]
        %v859 = vld [vmem:[#allocation2 + $0xf8] sm:$0xff]
        %860 = vst [vmem:[%s224] sm:$0xff] %v828
        %861 = vst [vmem:[%s224 + $0x8] sm:$0xff] %v829
        %862 = vst [vmem:[%s224 + $0x10] sm:$0xff] %v830
        %863 = vst [vmem:[%s224 + $0x18] sm:$0xff] %v831
        %864 = vst [vmem:[%s224 + $0x20] sm:$0xff] %v832
        %865 = vst [vmem:[%s224 + $0x28] sm:$0xff] %v833
        %866 = vst [vmem:[%s224 + $0x30] sm:$0xff] %v834
        %867 = vst [vmem:[%s224 + $0x38] sm:$0xff] %v835
        %868 = vst [vmem:[%s224 + $0x40] sm:$0xff] %v836
        %869 = vst [vmem:[%s224 + $0x48] sm:$0xff] %v837
        %870 = vst [vmem:[%s224 + $0x50] sm:$0xff] %v838
        %871 = vst [vmem:[%s224 + $0x58] sm:$0xff] %v839
        %872 = vst [vmem:[%s224 + $0x60] sm:$0xff] %v840
        %873 = vst [vmem:[%s224 + $0x68] sm:$0xff] %v841
        %874 = vst [vmem:[%s224 + $0x70] sm:$0xff] %v842
        %875 = vst [vmem:[%s224 + $0x78] sm:$0xff] %v843
        %876 = vst [vmem:[%s224 + $0x80] sm:$0xff] %v844
        %877 = vst [vmem:[%s224 + $0x88] sm:$0xff] %v845
        %878 = vst [vmem:[%s224 + $0x90] sm:$0xff] %v846
        %879 = vst [vmem:[%s224 + $0x98] sm:$0xff] %v847
        %880 = vst [vmem:[%s224 + $0xa0] sm:$0xff] %v848
        %881 = vst [vmem:[%s224 + $0xa8] sm:$0xff] %v849
        %882 = vst [vmem:[%s224 + $0xb0] sm:$0xff] %v850
        %883 = vst [vmem:[%s224 + $0xb8] sm:$0xff] %v851
        %884 = vst [vmem:[%s224 + $0xc0] sm:$0xff] %v852
        %885 = vst [vmem:[%s224 + $0xc8] sm:$0xff] %v853
        %886 = vst [vmem:[%s224 + $0xd0] sm:$0xff] %v854
        %887 = vst [vmem:[%s224 + $0xd8] sm:$0xff] %v855
        %888 = vst [vmem:[%s224 + $0xe0] sm:$0xff] %v856
        %889 = vst [vmem:[%s224 + $0xe8] sm:$0xff] %v857
        %890 = vst [vmem:[%s224 + $0xf0] sm:$0xff] %v858
        %891 = vst [vmem:[%s224 + $0xf8] sm:$0xff] %v859
      $region36: #{pallas_matmul.1} parent=27 // pred_fallthru
        _
      %s892 = smul.u32 32, %s18
      %p893 = scmp.lt.s32.totalorder %s892, 255
      %s894 = scalar_select %p893, %s892, 255
      %p895 = scmp.lt.s32.totalorder %s19, 0
      %s896 = scalar_select %p895, %s19, 0
      %s897 = sadd.s32 %s896, %s894
      %s898 = smul.addr %s897, 8
      %s899 = scalar_lea.vmem %s2, %s898
      // Predicated region
      $region37: #{pallas_matmul.1} parent=27 // pred_check
        %p900 = pneg %p108
      $region38: #{pallas_matmul.1} parent=27 // pred_check_branch
        %902 = sbr.rel (%p900) target = $region40
      $region39: #{pallas_matmul.1} parent=27 // pred_region
        %s903 = smul.u32 32, %s18
      $region40: #{pallas_matmul.1} parent=27 // pred_fallthru
        _
    $region28: #{pallas_matmul.1} parent=5 // pred_fallthru
      _
    %p904 = scmp.le.s32.totalorder 2, %s8
    // Predicated region
    $region41: #{pallas_matmul.1} parent=5 // pred_check
      %p905 = pneg %p904
    $region42: #{pallas_matmul.1} parent=5 // pred_check_branch
      %907 = sbr.rel (%p905) target = $region44
    $region43: #{pallas_matmul.1} parent=5 // pred_region
      %s908 = ssub.s32 %s8, 2
      // Predicated region
      $region45: #{pallas_matmul.1} parent=43 // pred_check
        %p909 = pneg %p114
      $region46: #{pallas_matmul.1} parent=43 // pred_check_branch
        %911 = sbr.rel (%p909) target = $region48
      $region47: #{pallas_matmul.1} parent=43 // pred_region
        %s912 = smul.u32 32, %s21
        %p913 = scmp.lt.s32.totalorder %s912, 255
        %s914 = scalar_select %p913, %s912, 255
        %p915 = scmp.lt.s32.totalorder %s22, 0
        %s916 = scalar_select %p915, %s22, 0
        %s917 = sadd.s32 %s916, %s914
        %s918 = smul.addr %s917, 8
        %s919 = scalar_lea.vmem %s2, %s918
      $region48: #{pallas_matmul.1} parent=43 // pred_fallthru
        _
    $region44: #{pallas_matmul.1} parent=5 // pred_fallthru
      _
  $region6: #{pallas_matmul.1} parent=0 // loop_footer
    %s12 = sadd.s32 1, %s8
  $region7: #{pallas_matmul.1} parent=0 // loop_footer_branch
    %7 = sbr.rel target = $region3
  $region8: #{pallas_matmul.1} parent=0 // loop_exit
    _

</llo_original>
